<compile_context>
chip_gen: v7x
topology: tpu7x:2x2x1
jax: 0.10.0
libtpu: 0.0.40
codegen_flags: <defaults>
</compile_context>

<pallas_src>
import functools

import jax
import jax.numpy as jnp
from jax import lax
from jax.experimental import pallas as pl
from jax.experimental.pallas import tpu as pltpu

EPS = 1e-6


def _softplus(x):
    # Matches torch.nn.functional.softplus (beta=1, threshold=20), in f32.
    return jnp.where(x > 20.0, x, jnp.log1p(jnp.exp(jnp.minimum(x, 20.0))))


def pam_kernel(x_ref, wvk_ref, bvk_ref, wq_ref, bq_ref, gamma_ref, o_ref,
               kvt_sc, ksum_sc, *,
               channels, m_inner, n_valid, n_tile,
               compute_dtype, needs_mask, approx_recip):
    """grid = (batch, pass, n_tile).

    x_ref   : [C, n_tile]   x dtype (f32 in the test); cast in-kernel for the MXU
    wvk_ref : [C + M, C]    fused (value | key) weight, compute dtype
    bvk_ref : [C + M, 1]    fused (value | key) bias, f32
    wq_ref  : [M, C]        query weight, compute dtype
    bq_ref  : [M, 1]        query bias, f32
    gamma   : (1,) scalar in SMEM
    o_ref   : [C, n_tile]   x dtype
    kvt_sc  : [C, M] f32    per-batch KV^T accumulator (VMEM scratch)
    ksum_sc : [M, 1] f32    per-batch sum_n K accumulator (VMEM scratch)
    """
    p = pl.program_id(1)   # 0: accumulate KV / Ksum,  1: emit output
    j = pl.program_id(2)   # N-tile index

    x = x_ref[...]                       # [C, n_tile], original precision
    x_c = x.astype(compute_dtype)        # cast at point of use (MXU operand)

    @pl.when(jnp.logical_and(p == 0, j == 0))
    def _init():
        kvt_sc[...] = jnp.zeros_like(kvt_sc)
        ksum_sc[...] = jnp.zeros_like(ksum_sc)

    @pl.when(p == 0)
    def _accumulate():
        vk = jnp.dot(wvk_ref[...], x_c,
                     preferred_element_type=jnp.float32) + bvk_ref[...]
        v = vk[:channels, :]                      # [C, n_tile]
        k = _softplus(vk[channels:, :])           # [M, n_tile]
        if needs_mask:
            # Zero K on padded lanes so kv / ksum ignore them.
            lane = lax.broadcasted_iota(jnp.int32, (1, n_tile), 1) + j * n_tile
            k = k * (lane < n_valid).astype(jnp.float32)
        # KV^T = V @ K^T (explicit NT contraction over the lane/N axis) -> [C, M].
        kvt_sc[...] += lax.dot_general(v, k, (((1,), (1,)), ((), ())),
                                       preferred_element_type=jnp.float32)
        ksum_sc[...] += jnp.sum(k, axis=-1, keepdims=True)   # [M, 1]

    @pl.when(p == 1)
    def _emit():
        q = _softplus(jnp.dot(wq_ref[...], x_c,
                              preferred_element_type=jnp.float32) + bq_ref[...])
        kvt = kvt_sc[...]                        # [C, M]
        ksum = ksum_sc[...] + EPS                # [M, 1]

        if m_inner <= 8:
            # Tiny contraction (M = 4): unrolled VPU outer-product FMAs; the
            # denominator rides along on the same FMAs (no XLU sublane reduce).
            acc = kvt[:, 0:1] * q[0:1, :]
            den = ksum[0:1, :] * q[0:1, :]
            for m in range(1, m_inner):
                acc = acc + kvt[:, m:m + 1] * q[m:m + 1, :]
                den = den + ksum[m:m + 1, :] * q[m:m + 1, :]
        else:
            # Production M (e.g. C//8 = 64): MXU contraction; single XLU reduce
            # for the denominator.
            acc = jnp.dot(kvt, q, preferred_element_type=jnp.float32)
            den = jnp.sum(q * ksum, axis=0, keepdims=True)

        inv = pl.reciprocal(den, approx=approx_recip)   # EUP slot when approx
        g = gamma_ref[0]
        # Padded output lanes hold arbitrary finite values; the wrapper slices [:N].
        o_ref[...] = (x + g * (acc * inv)).astype(o_ref.dtype)


def pam_init(wq, bq, wk, bk, wv, bv, *, compute_dtype=jnp.bfloat16):
    """Build fused per-pass projection parameters ONCE (module-init time)."""
    C = wv.shape[0]
    M = wq.shape[0]
    w_vk = jnp.concatenate([jnp.asarray(wv), jnp.asarray(wk)], axis=0).astype(compute_dtype)
    b_vk = jnp.concatenate([jnp.asarray(bv), jnp.asarray(bk)], axis=0).astype(jnp.float32).reshape(C + M, 1)
    w_q = jnp.asarray(wq).astype(compute_dtype)
    b_q = jnp.asarray(bq).astype(jnp.float32).reshape(M, 1)
    return w_vk, b_vk, w_q, b_q


def _choose_n_tiling(n, channels):
    n128 = ((n + 127) // 128) * 128
    # ~2 MiB of f32 x per tile keeps double-buffered in/out blocks plus f32
    # intermediates well inside scoped VMEM on every generation (incl. 64 MiB v7x).
    target = max(128, ((2 << 20) // (4 * channels)) // 128 * 128)
    n_tile = min(n128, target, 2048)
    n_pad = ((n + n_tile - 1) // n_tile) * n_tile
    return n_tile, n_pad


@functools.partial(jax.jit, static_argnames=("compute_dtype",))
def _pam_forward(x_nchw, w_vk, b_vk, w_q, b_q, gamma, *, compute_dtype):
    B, C, H, W = x_nchw.shape
    assert H == W, "PAM_Module semantics require square spatial dims"
    N = H * W
    M = w_q.shape[0]

    n_tile, n_pad = _choose_n_tiling(N, C)
    num_tiles = n_pad // n_tile

    x_bcn = x_nchw.reshape(B, C, N)               # free: trailing dims merge
    if n_pad != N:
        x_bcn = jnp.pad(x_bcn, ((0, 0), (0, 0), (0, n_pad - N)))

    kernel = functools.partial(
        pam_kernel, channels=C, m_inner=M, n_valid=N, n_tile=n_tile,
        compute_dtype=compute_dtype, needs_mask=(n_pad != N),
        approx_recip=(compute_dtype != jnp.float32))

    out = pl.pallas_call(
        kernel,
        out_shape=jax.ShapeDtypeStruct((B, C, n_pad), x_nchw.dtype),
        grid=(B, 2, num_tiles),
        in_specs=[
            pl.BlockSpec((pl.Squeezed(), C, n_tile), lambda b, p, j: (b, 0, j)),   # x
            pl.BlockSpec((C + M, C), lambda b, p, j: (0, 0)),                      # w_vk
            pl.BlockSpec((C + M, 1), lambda b, p, j: (0, 0)),                      # b_vk
            pl.BlockSpec((M, C), lambda b, p, j: (0, 0)),                          # w_q
            pl.BlockSpec((M, 1), lambda b, p, j: (0, 0)),                          # b_q
            pl.BlockSpec(memory_space=pltpu.MemorySpace.SMEM),                     # gamma
        ],
        # j*p pins the output block to tile 0 during pass 0, so no garbage block is
        # ever flushed; pass 1 streams each tile exactly once.
        out_specs=pl.BlockSpec((pl.Squeezed(), C, n_tile),
                               lambda b, p, j: (b, 0, j * p)),
        scratch_shapes=[pltpu.VMEM((C, M), jnp.float32),    # kvt accumulator
                        pltpu.VMEM((M, 1), jnp.float32)],   # ksum accumulator
        compiler_params=pltpu.CompilerParams(
            dimension_semantics=("parallel", "arbitrary", "arbitrary"),
            vmem_limit_bytes=48 << 20),
    )(x_bcn, w_vk, b_vk, w_q, b_q, gamma.reshape(1).astype(jnp.float32))

    if n_pad != N:
        out = out[:, :, :N]
    return out.reshape(B, C, H, W)


def pam_forward(x_nchw, params, gamma, *, compute_dtype=jnp.bfloat16):
    w_vk, b_vk, w_q, b_q = params
    return _pam_forward(x_nchw, w_vk, b_vk, w_q, b_q, gamma,
                        compute_dtype=compute_dtype)


def pam_reference(x_nchw, wq, bq, wk, bk, wv, bv, gamma):
    """Pure-JAX f32 reference mirroring the PyTorch forward."""
    B, C, H, W = x_nchw.shape
    N = H * W
    x = x_nchw.reshape(B, C, N).astype(jnp.float32)
    q = _softplus(jnp.einsum("mc,bcn->bmn", wq, x) + bq[None, :, None])   # [B, M, N]
    k = _softplus(jnp.einsum("mc,bcn->bmn", wk, x) + bk[None, :, None])   # [B, M, N]
    v = jnp.einsum("dc,bcn->bdn", wv, x) + bv[None, :, None]              # [B, C, N]
    kv = jnp.einsum("bmn,bcn->bmc", k, v)                                 # [B, M, C]
    norm = 1.0 / jnp.einsum("bmn,bm->bn", q, jnp.sum(k, axis=-1) + EPS)   # [B, N]
    wv_out = jnp.einsum("bmn,bmc,bn->bcn", q, kv, norm)                   # [B, C, N]
    return (x + gamma.reshape(()) * wv_out).reshape(B, C, H, W)


if __name__ == "__main__":
    # in_places=32, scale=8 -> inner dim M = 4; batch=2, spatial 16x16 (N=256).
    B, C, H, W = 2, 32, 16, 16
    scale = 8
    M = C // scale

    key = jax.random.PRNGKey(0)
    kx, k1, k2, k3, k4, k5, k6 = jax.random.split(key, 7)

    x = jax.random.normal(kx, (B, C, H, W), dtype=jnp.float32)

    # Conv2d 1x1 -> [out, in] matrices + biases.
    wq = 0.1 * jax.random.normal(k1, (M, C), dtype=jnp.float32)
    bq = 0.1 * jax.random.normal(k2, (M,), dtype=jnp.float32)
    wk = 0.1 * jax.random.normal(k3, (M, C), dtype=jnp.float32)
    bk = 0.1 * jax.random.normal(k4, (M,), dtype=jnp.float32)
    wv = 0.1 * jax.random.normal(k5, (C, C), dtype=jnp.float32)
    bv = 0.1 * jax.random.normal(k6, (C,), dtype=jnp.float32)
    # Non-zero gamma so the attention branch is exercised (module inits gamma to 0,
    # in which case output == x and the check would be vacuous).
    gamma = jnp.array([0.85], dtype=jnp.float32)

    ref = pam_reference(x, wq, bq, wk, bk, wv, bv, gamma)

    # f32 compute path (exact reciprocal): tight check against the f32 reference.
    params_f32 = pam_init(wq, bq, wk, bk, wv, bv, compute_dtype=jnp.float32)
    out_f32 = jax.block_until_ready(
        pam_forward(x, params_f32, gamma, compute_dtype=jnp.float32))
    assert out_f32.shape == (B, C, H, W)
    assert jnp.allclose(out_f32, ref, atol=5e-3, rtol=5e-3), "f32 path mismatch vs reference"

    # bf16 compute path (default / production): looser tolerance.
    params_bf16 = pam_init(wq, bq, wk, bk, wv, bv, compute_dtype=jnp.bfloat16)
    out_bf16 = jax.block_until_ready(
        pam_forward(x, params_bf16, gamma, compute_dtype=jnp.bfloat16))
    assert out_bf16.shape == (B, C, H, W)
    assert jnp.allclose(out_bf16, ref, atol=3e-2, rtol=3e-2), "bf16 path mismatch vs reference"

    print("KERNEL_OK")
</pallas_src>

<mosaic_0001>
module attributes {stable_mosaic.version = 11 : i64} {
  func.func @pam_kernel(%arg0: i32, %arg1: i32, %arg2: i32, %arg3: memref<1x32x256xf32, #tpu.memory_space<vmem>>, %arg4: memref<36x32xf32, #tpu.memory_space<vmem>>, %arg5: memref<36x1xf32, #tpu.memory_space<vmem>>, %arg6: memref<4x32xf32, #tpu.memory_space<vmem>>, %arg7: memref<4x1xf32, #tpu.memory_space<vmem>>, %arg8: memref<1xf32, #tpu.memory_space<smem>>, %arg9: memref<1x32x256xf32, #tpu.memory_space<vmem>>, %arg10: memref<32x4xf32, #tpu.memory_space<vmem>>, %arg11: memref<4x1xf32, #tpu.memory_space<vmem>>) attributes {dimension_semantics = [#tpu.dimension_semantics<parallel>, #tpu.dimension_semantics<arbitrary>, #tpu.dimension_semantics<arbitrary>], iteration_bounds = array<i64: 2, 2, 1>, scalar_prefetch = 0 : i64, scratch_operands = 2 : i64, tpu.core_type = #tpu.core_type<tc>, window_params = [{transform_indices = @transform_0, window_bounds = array<i64: 1, 32, 256>}, {pipeline_mode = #tpu.pipeline_mode<synchronous>, transform_indices = @transform_1, window_bounds = array<i64: 36, 32>}, {pipeline_mode = #tpu.pipeline_mode<synchronous>, transform_indices = @transform_2, window_bounds = array<i64: 36, 1>}, {pipeline_mode = #tpu.pipeline_mode<synchronous>, transform_indices = @transform_3, window_bounds = array<i64: 4, 32>}, {pipeline_mode = #tpu.pipeline_mode<synchronous>, transform_indices = @transform_4, window_bounds = array<i64: 4, 1>}, {transform_indices = @transform_5, window_bounds = array<i64: 1>}, {transform_indices = @transform_6, window_bounds = array<i64: 1, 32, 256>}]} {
    %c0 = arith.constant 0 : index
    %c0_0 = arith.constant 0 : index
    %c0_1 = arith.constant 0 : index
    %0 = vector.load %arg3[%c0, %c0_0, %c0_1] : memref<1x32x256xf32, #tpu.memory_space<vmem>>, vector<1x32x256xf32>
    %1 = vector.shape_cast %0 : vector<1x32x256xf32> to vector<32x256xf32>
    %c0_i32 = arith.constant 0 : i32
    %2 = arith.cmpi eq, %arg1, %c0_i32 : i32
    %c0_i32_2 = arith.constant 0 : i32
    %3 = arith.cmpi eq, %arg2, %c0_i32_2 : i32
    %4 = arith.andi %2, %3 : i1
    %5 = arith.extui %4 : i1 to i32
    %c0_i32_3 = arith.constant 0 : i32
    %6 = arith.cmpi ne, %5, %c0_i32_3 : i32
    scf.if %6 {
      %cst = arith.constant 0.000000e+00 : f32
      %13 = vector.broadcast %cst : f32 to vector<32x4xf32>
      %c0_7 = arith.constant 0 : index
      %c0_8 = arith.constant 0 : index
      %14 = vector.load %arg10[%c0_7, %c0_8] : memref<32x4xf32, #tpu.memory_space<vmem>>, vector<32x4xf32>
      tpu.vector_store %arg10[%c0_7, %c0_8], %13 {strides = array<i32>} : memref<32x4xf32, #tpu.memory_space<vmem>>, vector<32x4xf32>,
      %cst_9 = arith.constant 0.000000e+00 : f32
      %15 = vector.broadcast %cst_9 : f32 to vector<4x1xf32>
      %c0_10 = arith.constant 0 : index
      %c0_11 = arith.constant 0 : index
      %16 = vector.load %arg11[%c0_10, %c0_11] : memref<4x1xf32, #tpu.memory_space<vmem>>, vector<4x1xf32>
      tpu.vector_store %arg11[%c0_10, %c0_11], %15 {strides = array<i32>} : memref<4x1xf32, #tpu.memory_space<vmem>>, vector<4x1xf32>,
    } else {
    }
    %c0_i32_4 = arith.constant 0 : i32
    %7 = arith.cmpi eq, %arg1, %c0_i32_4 : i32
    %8 = arith.extui %7 : i1 to i32
    %c0_i32_5 = arith.constant 0 : i32
    %9 = arith.cmpi ne, %8, %c0_i32_5 : i32
    scf.if %9 {
      %c0_7 = arith.constant 0 : index
      %c0_8 = arith.constant 0 : index
      %13 = vector.load %arg4[%c0_7, %c0_8] : memref<36x32xf32, #tpu.memory_space<vmem>>, vector<36x32xf32>
      %cst = arith.constant dense<0.000000e+00> : vector<36x256xf32>
      %14 = tpu.matmul %13, %1, %cst {dimension_numbers = #tpu.dot_dimension_numbers<[1], [0], [0], [1], [0, 0, 1, 1], [], []>} : vector<36x32xf32>, vector<32x256xf32>, vector<36x256xf32> -> vector<36x256xf32>
      %c0_9 = arith.constant 0 : index
      %c0_10 = arith.constant 0 : index
      %15 = vector.load %arg5[%c0_9, %c0_10] : memref<36x1xf32, #tpu.memory_space<vmem>>, vector<36x1xf32>
      %16 = vector.broadcast %15 : vector<36x1xf32> to vector<36x256xf32>
      %17 = arith.addf %14, %16 : vector<36x256xf32>
      %18 = vector.extract_strided_slice %17 {offsets = [0, 0], sizes = [32, 256], strides = [1, 1]} : vector<36x256xf32> to vector<32x256xf32>
      %19 = vector.extract_strided_slice %17 {offsets = [32, 0], sizes = [4, 256], strides = [1, 1]} : vector<36x256xf32> to vector<4x256xf32>
      %cst_11 = arith.constant 2.000000e+01 : f32
      %20 = vector.broadcast %cst_11 : f32 to vector<4x256xf32>
      %21 = arith.cmpf ogt, %19, %20 : vector<4x256xf32>
      %cst_12 = arith.constant 2.000000e+01 : f32
      %22 = vector.broadcast %cst_12 : f32 to vector<4x256xf32>
      %23 = arith.minimumf %19, %22 : vector<4x256xf32>
      %24 = math.exp %23 : vector<4x256xf32>
      %25 = math.log1p %24 : vector<4x256xf32>
      %26 = arith.select %21, %19, %25 : vector<4x256xi1>, vector<4x256xf32>
      %c0_13 = arith.constant 0 : index
      %c0_14 = arith.constant 0 : index
      %27 = vector.load %arg10[%c0_13, %c0_14] : memref<32x4xf32, #tpu.memory_space<vmem>>, vector<32x4xf32>
      %cst_15 = arith.constant dense<0.000000e+00> : vector<32x4xf32>
      %28 = tpu.matmul %18, %26, %cst_15 {dimension_numbers = #tpu.dot_dimension_numbers<[1], [1], [0], [0], [0, 0, 1, 0], [], []>} : vector<32x256xf32>, vector<4x256xf32>, vector<32x4xf32> -> vector<32x4xf32>
      %29 = arith.addf %27, %28 : vector<32x4xf32>
      %c0_16 = arith.constant 0 : index
      %c0_17 = arith.constant 0 : index
      %30 = vector.load %arg10[%c0_16, %c0_17] : memref<32x4xf32, #tpu.memory_space<vmem>>, vector<32x4xf32>
      tpu.vector_store %arg10[%c0_16, %c0_17], %29 {strides = array<i32>} : memref<32x4xf32, #tpu.memory_space<vmem>>, vector<32x4xf32>,
      %c0_18 = arith.constant 0 : index
      %c0_19 = arith.constant 0 : index
      %31 = vector.load %arg11[%c0_18, %c0_19] : memref<4x1xf32, #tpu.memory_space<vmem>>, vector<4x1xf32>
      %cst_20 = arith.constant dense<0.000000e+00> : vector<4xf32>
      %32 = vector.multi_reduction <add>, %26, %cst_20 [1] : vector<4x256xf32> to vector<4xf32>
      %33 = vector.shape_cast %32 : vector<4xf32> to vector<4x1xf32>
      %34 = arith.addf %31, %33 : vector<4x1xf32>
      %c0_21 = arith.constant 0 : index
      %c0_22 = arith.constant 0 : index
      %35 = vector.load %arg11[%c0_21, %c0_22] : memref<4x1xf32, #tpu.memory_space<vmem>>, vector<4x1xf32>
      tpu.vector_store %arg11[%c0_21, %c0_22], %34 {strides = array<i32>} : memref<4x1xf32, #tpu.memory_space<vmem>>, vector<4x1xf32>,
    } else {
    }
    %c1_i32 = arith.constant 1 : i32
    %10 = arith.cmpi eq, %arg1, %c1_i32 : i32
    %11 = arith.extui %10 : i1 to i32
    %c0_i32_6 = arith.constant 0 : i32
    %12 = arith.cmpi ne, %11, %c0_i32_6 : i32
    scf.if %12 {
      %c0_7 = arith.constant 0 : index
      %c0_8 = arith.constant 0 : index
      %13 = vector.load %arg6[%c0_7, %c0_8] : memref<4x32xf32, #tpu.memory_space<vmem>>, vector<4x32xf32>
      %cst = arith.constant dense<0.000000e+00> : vector<4x256xf32>
      %14 = tpu.matmul %13, %1, %cst {dimension_numbers = #tpu.dot_dimension_numbers<[1], [0], [0], [1], [0, 0, 1, 1], [], []>} : vector<4x32xf32>, vector<32x256xf32>, vector<4x256xf32> -> vector<4x256xf32>
      %c0_9 = arith.constant 0 : index
      %c0_10 = arith.constant 0 : index
      %15 = vector.load %arg7[%c0_9, %c0_10] : memref<4x1xf32, #tpu.memory_space<vmem>>, vector<4x1xf32>
      %16 = vector.broadcast %15 : vector<4x1xf32> to vector<4x256xf32>
      %17 = arith.addf %14, %16 : vector<4x256xf32>
      %cst_11 = arith.constant 2.000000e+01 : f32
      %18 = vector.broadcast %cst_11 : f32 to vector<4x256xf32>
      %19 = arith.cmpf ogt, %17, %18 : vector<4x256xf32>
      %cst_12 = arith.constant 2.000000e+01 : f32
      %20 = vector.broadcast %cst_12 : f32 to vector<4x256xf32>
      %21 = arith.minimumf %17, %20 : vector<4x256xf32>
      %22 = math.exp %21 : vector<4x256xf32>
      %23 = math.log1p %22 : vector<4x256xf32>
      %24 = arith.select %19, %17, %23 : vector<4x256xi1>, vector<4x256xf32>
      %c0_13 = arith.constant 0 : index
      %c0_14 = arith.constant 0 : index
      %25 = vector.load %arg10[%c0_13, %c0_14] : memref<32x4xf32, #tpu.memory_space<vmem>>, vector<32x4xf32>
      %c0_15 = arith.constant 0 : index
      %c0_16 = arith.constant 0 : index
      %26 = vector.load %arg11[%c0_15, %c0_16] : memref<4x1xf32, #tpu.memory_space<vmem>>, vector<4x1xf32>
      %cst_17 = arith.constant 9.99999997E-7 : f32
      %27 = vector.broadcast %cst_17 : f32 to vector<4x1xf32>
      %28 = arith.addf %26, %27 : vector<4x1xf32>
      %29 = vector.extract_strided_slice %25 {offsets = [0, 0], sizes = [32, 1], strides = [1, 1]} : vector<32x4xf32> to vector<32x1xf32>
      %30 = vector.extract_strided_slice %24 {offsets = [0, 0], sizes = [1, 256], strides = [1, 1]} : vector<4x256xf32> to vector<1x256xf32>
      %31 = vector.broadcast %29 : vector<32x1xf32> to vector<32x256xf32>
      %32 = vector.broadcast %30 : vector<1x256xf32> to vector<32x256xf32>
      %33 = arith.mulf %31, %32 : vector<32x256xf32>
      %34 = vector.extract_strided_slice %28 {offsets = [0, 0], sizes = [1, 1], strides = [1, 1]} : vector<4x1xf32> to vector<1x1xf32>
      %35 = vector.extract_strided_slice %24 {offsets = [0, 0], sizes = [1, 256], strides = [1, 1]} : vector<4x256xf32> to vector<1x256xf32>
      %36 = vector.broadcast %34 : vector<1x1xf32> to vector<1x256xf32>
      %37 = arith.mulf %36, %35 : vector<1x256xf32>
      %38 = vector.extract_strided_slice %25 {offsets = [0, 1], sizes = [32, 1], strides = [1, 1]} : vector<32x4xf32> to vector<32x1xf32>
      %39 = vector.extract_strided_slice %24 {offsets = [1, 0], sizes = [1, 256], strides = [1, 1]} : vector<4x256xf32> to vector<1x256xf32>
      %40 = vector.broadcast %38 : vector<32x1xf32> to vector<32x256xf32>
      %41 = vector.broadcast %39 : vector<1x256xf32> to vector<32x256xf32>
      %42 = arith.mulf %40, %41 : vector<32x256xf32>
      %43 = arith.addf %33, %42 : vector<32x256xf32>
      %44 = vector.extract_strided_slice %28 {offsets = [1, 0], sizes = [1, 1], strides = [1, 1]} : vector<4x1xf32> to vector<1x1xf32>
      %45 = vector.extract_strided_slice %24 {offsets = [1, 0], sizes = [1, 256], strides = [1, 1]} : vector<4x256xf32> to vector<1x256xf32>
      %46 = vector.broadcast %44 : vector<1x1xf32> to vector<1x256xf32>
      %47 = arith.mulf %46, %45 : vector<1x256xf32>
      %48 = arith.addf %37, %47 : vector<1x256xf32>
      %49 = vector.extract_strided_slice %25 {offsets = [0, 2], sizes = [32, 1], strides = [1, 1]} : vector<32x4xf32> to vector<32x1xf32>
      %50 = vector.extract_strided_slice %24 {offsets = [2, 0], sizes = [1, 256], strides = [1, 1]} : vector<4x256xf32> to vector<1x256xf32>
      %51 = vector.broadcast %49 : vector<32x1xf32> to vector<32x256xf32>
      %52 = vector.broadcast %50 : vector<1x256xf32> to vector<32x256xf32>
      %53 = arith.mulf %51, %52 : vector<32x256xf32>
      %54 = arith.addf %43, %53 : vector<32x256xf32>
      %55 = vector.extract_strided_slice %28 {offsets = [2, 0], sizes = [1, 1], strides = [1, 1]} : vector<4x1xf32> to vector<1x1xf32>
      %56 = vector.extract_strided_slice %24 {offsets = [2, 0], sizes = [1, 256], strides = [1, 1]} : vector<4x256xf32> to vector<1x256xf32>
      %57 = vector.broadcast %55 : vector<1x1xf32> to vector<1x256xf32>
      %58 = arith.mulf %57, %56 : vector<1x256xf32>
      %59 = arith.addf %48, %58 : vector<1x256xf32>
      %60 = vector.extract_strided_slice %25 {offsets = [0, 3], sizes = [32, 1], strides = [1, 1]} : vector<32x4xf32> to vector<32x1xf32>
      %61 = vector.extract_strided_slice %24 {offsets = [3, 0], sizes = [1, 256], strides = [1, 1]} : vector<4x256xf32> to vector<1x256xf32>
      %62 = vector.broadcast %60 : vector<32x1xf32> to vector<32x256xf32>
      %63 = vector.broadcast %61 : vector<1x256xf32> to vector<32x256xf32>
      %64 = arith.mulf %62, %63 : vector<32x256xf32>
      %65 = arith.addf %54, %64 : vector<32x256xf32>
      %66 = vector.extract_strided_slice %28 {offsets = [3, 0], sizes = [1, 1], strides = [1, 1]} : vector<4x1xf32> to vector<1x1xf32>
      %67 = vector.extract_strided_slice %24 {offsets = [3, 0], sizes = [1, 256], strides = [1, 1]} : vector<4x256xf32> to vector<1x256xf32>
      %68 = vector.broadcast %66 : vector<1x1xf32> to vector<1x256xf32>
      %69 = arith.mulf %68, %67 : vector<1x256xf32>
      %70 = arith.addf %59, %69 : vector<1x256xf32>
      %71 = tpu.reciprocal %70 : vector<1x256xf32> -> vector<1x256xf32>
      %c0_18 = arith.constant 0 : index
      %72 = memref.load %arg8[%c0_18] : memref<1xf32, #tpu.memory_space<smem>>
      %73 = vector.broadcast %71 : vector<1x256xf32> to vector<32x256xf32>
      %74 = arith.mulf %65, %73 : vector<32x256xf32>
      %75 = vector.broadcast %72 : f32 to vector<32x256xf32>
      %76 = arith.mulf %75, %74 : vector<32x256xf32>
      %77 = arith.addf %1, %76 : vector<32x256xf32>
      %c0_19 = arith.constant 0 : index
      %c0_20 = arith.constant 0 : index
      %c0_21 = arith.constant 0 : index
      %78 = vector.load %arg9[%c0_19, %c0_20, %c0_21] : memref<1x32x256xf32, #tpu.memory_space<vmem>>, vector<1x32x256xf32>
      %79 = vector.shape_cast %78 : vector<1x32x256xf32> to vector<32x256xf32>
      %80 = vector.shape_cast %77 : vector<32x256xf32> to vector<1x32x256xf32>
      tpu.vector_store %arg9[%c0_19, %c0_20, %c0_21], %80 {strides = array<i32>} : memref<1x32x256xf32, #tpu.memory_space<vmem>>, vector<1x32x256xf32>,
    } else {
    }
    return
  }
  func.func @transform_0(%arg0: i32, %arg1: i32, %arg2: i32) -> (i32, i32, i32) {
    %c0_i32 = arith.constant 0 : i32
    %c0_i32_0 = arith.constant 0 : i32
    return %arg0, %c0_i32, %arg2 : i32, i32, i32
  }
  func.func @transform_1(%arg0: i32, %arg1: i32, %arg2: i32) -> (i32, i32) {
    %c0_i32 = arith.constant 0 : i32
    %c0_i32_0 = arith.constant 0 : i32
    %c0_i32_1 = arith.constant 0 : i32
    return %c0_i32, %c0_i32_0 : i32, i32
  }
  func.func @transform_2(%arg0: i32, %arg1: i32, %arg2: i32) -> (i32, i32) {
    %c0_i32 = arith.constant 0 : i32
    %c0_i32_0 = arith.constant 0 : i32
    %c0_i32_1 = arith.constant 0 : i32
    return %c0_i32, %c0_i32_0 : i32, i32
  }
  func.func @transform_3(%arg0: i32, %arg1: i32, %arg2: i32) -> (i32, i32) {
    %c0_i32 = arith.constant 0 : i32
    %c0_i32_0 = arith.constant 0 : i32
    %c0_i32_1 = arith.constant 0 : i32
    return %c0_i32, %c0_i32_0 : i32, i32
  }
  func.func @transform_4(%arg0: i32, %arg1: i32, %arg2: i32) -> (i32, i32) {
    %c0_i32 = arith.constant 0 : i32
    %c0_i32_0 = arith.constant 0 : i32
    %c0_i32_1 = arith.constant 0 : i32
    return %c0_i32, %c0_i32_0 : i32, i32
  }
  func.func @transform_5(%arg0: i32, %arg1: i32, %arg2: i32) -> i32 {
    %c0_i32 = arith.constant 0 : i32
    %c0_i32_0 = arith.constant 0 : i32
    return %c0_i32 : i32
  }
  func.func @transform_6(%arg0: i32, %arg1: i32, %arg2: i32) -> (i32, i32, i32) {
    %0 = arith.muli %arg2, %arg1 : i32
    %c0_i32 = arith.constant 0 : i32
    %c0_i32_0 = arith.constant 0 : i32
    return %arg0, %c0_i32, %0 : i32, i32, i32
  }
}

</mosaic_0001>

<llo_original>
// kernel: _pam_forward.1
$region0: #{_pam_forward.1}
  #allocation0 [shape = 'u32[]', space=smem, size = 0x4, offset = 0x4, fixed_abs, tag = 'smem constant byte address 0x4 - core index']
  #allocation1 [shape = 'u32[144,128]{1,0:T(1,128)}', space=vmem, size = 0x12000, scoped, tag = 'internal scratch']
  #allocation2 [shape = 'f32[32,4]{1,0:T(8,128)}', space=vmem, size = 0x4000, scoped, tag = 'scratch operand']
  #allocation3 [shape = 'f32[4,1]{1,0:T(4,128)}', space=vmem, size = 0x800, scoped, tag = 'scratch operand']
  #allocation4 [shape = 'f32[1]{0:T(128)S(6)}', space=smem, size = 0x200, scoped, tag = 'scoped memory for _pam_forward.1']
  %s0 = inlined_call_operand.vmem [shape: f32[2,32,256], index: 0, kind: input, shape index: {}]
  %s1 = inlined_call_operand.vmem [shape: f32[36,32], index: 1, kind: input, shape index: {}]
  %s2 = inlined_call_operand.vmem [shape: f32[36,1], index: 2, kind: input, shape index: {}]
  %s3 = inlined_call_operand.vmem [shape: f32[4,32], index: 3, kind: input, shape index: {}]
  %s4 = inlined_call_operand.vmem [shape: f32[4,1], index: 4, kind: input, shape index: {}]
  %s5 = inlined_call_operand.<no memory space> [shape: f32[1], index: 5, kind: input, shape index: {}]
  %s6 = inlined_call_operand.vmem [shape: f32[2,32,256], index: 6, kind: output, shape index: {}]
  %s7 = sld [smem:[#allocation0]]
  $region69: #{_pam_forward.1} parent=0
    _
  %s9 = ssub.s32 1, %s7
  %s10 = scalar_select 0, %s9, %s7
  %11 = sst [smem:[#allocation4]] %s5
  loop: start=0, step=1, limit=6
  $region2: #{_pam_forward.1} parent=0 // loop_pre_header
    _
  $region3: #{_pam_forward.1} parent=0 // loop_header
    %s13 = sphi 0, %s17
    %p14 = scmp.ge.s32.totalorder %s13, 6
    %s20 = sphi 0, %s39
    %s21 = sphi 0, %s35
    %s22 = sphi 0, %s31
    %s23 = sphi 0, %s20
    %s24 = sphi 0, %s21
    %s25 = sphi 0, %s22
    %s26 = sphi 0, %s23
    %s27 = sphi 0, %s24
    %s28 = sphi 0, %s25
    %s44 = sphi 0, %s46
    %s47 = sphi 0, %s44
    %s48 = sphi 0, %s47
    %s64 = sphi 0, %s48
    %s68 = sphi 0, %s68
    %s70 = sphi 0, %s68
    %s71 = sphi 0, %s70
    %s85 = sphi 0, %s71
    %s89 = sphi 0, %s89
    %s91 = sphi 0, %s89
    %s92 = sphi 0, %s91
    %s106 = sphi 0, %s92
    %s110 = sphi 0, %s110
    %s112 = sphi 0, %s110
    %s113 = sphi 0, %s112
    %s127 = sphi 0, %s113
    %s131 = sphi 0, %s131
    %s133 = sphi 0, %s131
    %s134 = sphi 0, %s133
    %s148 = sphi 0, %s134
    %s152 = sphi 0, %s152
    %s154 = sphi 0, %s152
    %s155 = sphi 0, %s154
    %s169 = sphi 0, %s155
    %s179 = sphi 0, %s181
    %s182 = sphi 0, %s179
    %s183 = sphi 0, %s182
    %s199 = sphi 0, %s183
  $region4: #{_pam_forward.1} parent=0 // loop_header_branch
    %16 = sbr.rel (%p14) target = $region8
  $region5: #{_pam_forward.1} parent=0 // loop_body
    %s18 = ssub.s32 %s13, 1
    %s19 = ssub.s32 %s13, 2
    %s29 = sadd.s32 1, %s22
    %p30 = scmp.ge.s32.totalorder %s29, 1
    %s31 = scalar_select %p30, 0, %s29
    %s32 = sadd.s32 1, %s21
    %s33 = scalar_select %p30, %s32, %s21
    %p34 = scmp.ge.s32.totalorder %s33, 2
    %s35 = scalar_select %p34, 0, %s33
    %s36 = sadd.s32 1, %s20
    %s37 = scalar_select %p34, %s36, %s20
    %p38 = scmp.ge.s32.totalorder %s37, 2
    %s39 = scalar_select %p38, 0, %s37
    %s40 = ssub.s32 %s20, %s39
    %s41 = ssub.s32 %s22, %s31
    %s42 = sor.u32 %s40, %s41
    %p43 = scmp.eq.s32.totalorder %s42, 0
    %s45 = sadd.s32 %s44, 1
    %s46 = scalar_select %p43, %s44, %s45
    %p49 = pneg %p43
    %p50 = scmp.eq.s32.totalorder %s13, 3
    %p51 = por %p49, %p50
    %p52 = scmp.ne.s32.totalorder %s44, %s47
    %p53 = scmp.eq.s32.totalorder %s13, 0
    %p54 = por %p52, %p53
    %p55 = scmp.ne.s32.totalorder %s44, %s47
    %p56 = scmp.eq.s32.totalorder %s18, 3
    %p57 = por %p55, %p56
    %p58 = scmp.ne.s32.totalorder %s47, %s48
    %p59 = scmp.eq.s32.totalorder %s18, 0
    %p60 = por %p58, %p59
    %p61 = scmp.ne.s32.totalorder %s47, %s48
    %p62 = scmp.eq.s32.totalorder %s19, 3
    %p63 = por %p61, %p62
    %p65 = scmp.ne.s32.totalorder %s48, %s64
    %p66 = scmp.eq.s32.totalorder %s19, 0
    %p67 = por %p65, %p66
    %s69 = sadd.s32 %s68, 1
    %p72 = scmp.eq.s32.totalorder %s13, 3
    %p73 = scmp.ne.s32.totalorder %s68, %s70
    %p74 = scmp.eq.s32.totalorder %s13, 0
    %p75 = por %p73, %p74
    %p76 = scmp.ne.s32.totalorder %s68, %s70
    %p77 = scmp.eq.s32.totalorder %s18, 3
    %p78 = por %p76, %p77
    %p79 = scmp.ne.s32.totalorder %s70, %s71
    %p80 = scmp.eq.s32.totalorder %s18, 0
    %p81 = por %p79, %p80
    %p82 = scmp.ne.s32.totalorder %s70, %s71
    %p83 = scmp.eq.s32.totalorder %s19, 3
    %p84 = por %p82, %p83
    %p86 = scmp.ne.s32.totalorder %s71, %s85
    %p87 = scmp.eq.s32.totalorder %s19, 0
    %p88 = por %p86, %p87
    %s90 = sadd.s32 %s89, 1
    %p93 = scmp.eq.s32.totalorder %s13, 3
    %p94 = scmp.ne.s32.totalorder %s89, %s91
    %p95 = scmp.eq.s32.totalorder %s13, 0
    %p96 = por %p94, %p95
    %p97 = scmp.ne.s32.totalorder %s89, %s91
    %p98 = scmp.eq.s32.totalorder %s18, 3
    %p99 = por %p97, %p98
    %p100 = scmp.ne.s32.totalorder %s91, %s92
    %p101 = scmp.eq.s32.totalorder %s18, 0
    %p102 = por %p100, %p101
    %p103 = scmp.ne.s32.totalorder %s91, %s92
    %p104 = scmp.eq.s32.totalorder %s19, 3
    %p105 = por %p103, %p104
    %p107 = scmp.ne.s32.totalorder %s92, %s106
    %p108 = scmp.eq.s32.totalorder %s19, 0
    %p109 = por %p107, %p108
    %s111 = sadd.s32 %s110, 1
    %p114 = scmp.eq.s32.totalorder %s13, 3
    %p115 = scmp.ne.s32.totalorder %s110, %s112
    %p116 = scmp.eq.s32.totalorder %s13, 0
    %p117 = por %p115, %p116
    %p118 = scmp.ne.s32.totalorder %s110, %s112
    %p119 = scmp.eq.s32.totalorder %s18, 3
    %p120 = por %p118, %p119
    %p121 = scmp.ne.s32.totalorder %s112, %s113
    %p122 = scmp.eq.s32.totalorder %s18, 0
    %p123 = por %p121, %p122
    %p124 = scmp.ne.s32.totalorder %s112, %s113
    %p125 = scmp.eq.s32.totalorder %s19, 3
    %p126 = por %p124, %p125
    %p128 = scmp.ne.s32.totalorder %s113, %s127
    %p129 = scmp.eq.s32.totalorder %s19, 0
    %p130 = por %p128, %p129
    %s132 = sadd.s32 %s131, 1
    %p135 = scmp.eq.s32.totalorder %s13, 3
    %p136 = scmp.ne.s32.totalorder %s131, %s133
    %p137 = scmp.eq.s32.totalorder %s13, 0
    %p138 = por %p136, %p137
    %p139 = scmp.ne.s32.totalorder %s131, %s133
    %p140 = scmp.eq.s32.totalorder %s18, 3
    %p141 = por %p139, %p140
    %p142 = scmp.ne.s32.totalorder %s133, %s134
    %p143 = scmp.eq.s32.totalorder %s18, 0
    %p144 = por %p142, %p143
    %p145 = scmp.ne.s32.totalorder %s133, %s134
    %p146 = scmp.eq.s32.totalorder %s19, 3
    %p147 = por %p145, %p146
    %p149 = scmp.ne.s32.totalorder %s134, %s148
    %p150 = scmp.eq.s32.totalorder %s19, 0
    %p151 = por %p149, %p150
    %s153 = sadd.s32 %s152, 1
    %p156 = scmp.eq.s32.totalorder %s13, 3
    %p157 = scmp.ne.s32.totalorder %s152, %s154
    %p158 = scmp.eq.s32.totalorder %s13, 0
    %p159 = por %p157, %p158
    %p160 = scmp.ne.s32.totalorder %s152, %s154
    %p161 = scmp.eq.s32.totalorder %s18, 3
    %p162 = por %p160, %p161
    %p163 = scmp.ne.s32.totalorder %s154, %s155
    %p164 = scmp.eq.s32.totalorder %s18, 0
    %p165 = por %p163, %p164
    %p166 = scmp.ne.s32.totalorder %s154, %s155
    %p167 = scmp.eq.s32.totalorder %s19, 3
    %p168 = por %p166, %p167
    %p170 = scmp.ne.s32.totalorder %s155, %s169
    %p171 = scmp.eq.s32.totalorder %s19, 0
    %p172 = por %p170, %p171
    %s173 = smul.u32 %s22, %s21
    %s174 = smul.u32 %s31, %s35
    %s175 = ssub.s32 %s20, %s39
    %s176 = ssub.s32 %s173, %s174
    %s177 = sor.u32 %s175, %s176
    %p178 = scmp.eq.s32.totalorder %s177, 0
    %s180 = sadd.s32 %s179, 1
    %s181 = scalar_select %p178, %s179, %s180
    %p184 = pneg %p178
    %p185 = scmp.eq.s32.totalorder %s13, 3
    %p186 = por %p184, %p185
    %p187 = scmp.ne.s32.totalorder %s179, %s182
    %p188 = scmp.eq.s32.totalorder %s13, 0
    %p189 = por %p187, %p188
    %p190 = scmp.ne.s32.totalorder %s179, %s182
    %p191 = scmp.eq.s32.totalorder %s18, 3
    %p192 = por %p190, %p191
    %p193 = scmp.ne.s32.totalorder %s182, %s183
    %p194 = scmp.eq.s32.totalorder %s18, 0
    %p195 = por %p193, %p194
    %p196 = scmp.ne.s32.totalorder %s182, %s183
    %p197 = scmp.eq.s32.totalorder %s19, 3
    %p198 = por %p196, %p197
    %p200 = scmp.ne.s32.totalorder %s183, %s199
    %p201 = scmp.eq.s32.totalorder %s19, 0
    %p202 = por %p200, %p201
    %p203 = scmp.le.s32.totalorder 1, %s13
    %p204 = scmp.lt.s32.totalorder %s13, 5
    %p205 = pnand %p203, %p204
    %p206 = pneg %p205
    // Predicated region
    $region9: #{_pam_forward.1} parent=5 // pred_check
      _
    $region10: #{_pam_forward.1} parent=5 // pred_check_branch
      %208 = sbr.rel (%p205) target = $region12
    $region11: #{_pam_forward.1} parent=5 // pred_region
      %s209 = ssub.s32 %s13, 1
      // Predicated region
      $region13: #{_pam_forward.1} parent=11 // pred_check
        %p210 = pneg %p81
      $region14: #{_pam_forward.1} parent=11 // pred_check_branch
        %212 = sbr.rel (%p210) target = $region16
      $region15: #{_pam_forward.1} parent=11 // pred_region
        _
      $region16: #{_pam_forward.1} parent=11 // pred_fallthru
        _
      // Predicated region
      $region17: #{_pam_forward.1} parent=11 // pred_check
        %p213 = pneg %p102
      $region18: #{_pam_forward.1} parent=11 // pred_check_branch
        %215 = sbr.rel (%p213) target = $region20
      $region19: #{_pam_forward.1} parent=11 // pred_region
        _
      $region20: #{_pam_forward.1} parent=11 // pred_fallthru
        _
      // Predicated region
      $region21: #{_pam_forward.1} parent=11 // pred_check
        %p216 = pneg %p123
      $region22: #{_pam_forward.1} parent=11 // pred_check_branch
        %218 = sbr.rel (%p216) target = $region24
      $region23: #{_pam_forward.1} parent=11 // pred_region
        _
      $region24: #{_pam_forward.1} parent=11 // pred_fallthru
        _
      // Predicated region
      $region25: #{_pam_forward.1} parent=11 // pred_check
        %p219 = pneg %p144
      $region26: #{_pam_forward.1} parent=11 // pred_check_branch
        %221 = sbr.rel (%p219) target = $region28
      $region27: #{_pam_forward.1} parent=11 // pred_region
        _
      $region28: #{_pam_forward.1} parent=11 // pred_fallthru
        _
      // Predicated region
      $region29: #{_pam_forward.1} parent=11 // pred_check
        %p222 = pneg %p165
      $region30: #{_pam_forward.1} parent=11 // pred_check_branch
        %224 = sbr.rel (%p222) target = $region32
      $region31: #{_pam_forward.1} parent=11 // pred_region
        _
      $region32: #{_pam_forward.1} parent=11 // pred_fallthru
        _
    $region12: #{_pam_forward.1} parent=5 // pred_fallthru
      _
    %p225 = scmp.lt.s32.totalorder %s13, 4
    // Predicated region
    $region33: #{_pam_forward.1} parent=5 // pred_check
      %p226 = pneg %p225
    $region34: #{_pam_forward.1} parent=5 // pred_check_branch
      %228 = sbr.rel (%p226) target = $region36
    $region35: #{_pam_forward.1} parent=5 // pred_region
      // Predicated region
      $region37: #{_pam_forward.1} parent=35 // pred_check
        %p229 = pneg %p54
      $region38: #{_pam_forward.1} parent=35 // pred_check_branch
        %231 = sbr.rel (%p229) target = $region40
      $region39: #{_pam_forward.1} parent=35 // pred_region
        %s232 = smul.u32 2, %s22
        %p233 = scmp.lt.s32.totalorder %s20, 1
        %s234 = scalar_select %p233, %s20, 1
        %p235 = scmp.lt.s32.totalorder %s232, 1
        %s236 = scalar_select %p235, %s232, 1
        %s237 = smul.addr %s234, 8
        %s238 = sadd.s32 %s236, %s237
        %s239 = smul.addr %s238, 8
        %s240 = scalar_lea.vmem %s0, %s239
        %s241 = smul.u32 2, %s22
      $region40: #{_pam_forward.1} parent=35 // pred_fallthru
        _
    $region36: #{_pam_forward.1} parent=5 // pred_fallthru
      _
    %p242 = scmp.le.s32.totalorder 1, %s13
    %p243 = scmp.lt.s32.totalorder %s13, 5
    %p244 = pnand %p242, %p243
    %p245 = pneg %p244
    // Predicated region
    $region41: #{_pam_forward.1} parent=5 // pred_check
      _
    $region42: #{_pam_forward.1} parent=5 // pred_check_branch
      %247 = sbr.rel (%p244) target = $region44
    $region43: #{_pam_forward.1} parent=5 // pred_region
      %s248 = ssub.s32 %s13, 1
      %s249 = smul.u32 2, %s25
      %p250 = scmp.lt.s32.totalorder %s23, 1
      %s251 = scalar_select %p250, %s23, 1
      %p252 = scmp.lt.s32.totalorder %s249, 1
      %s253 = scalar_select %p252, %s249, 1
      %s254 = smul.addr %s251, 8
      %s255 = sadd.s32 %s253, %s254
      %s256 = smul.addr %s255, 8
      %s257 = scalar_lea.vmem %s0, %s256
      %p258 = pneg %p60
      %p259 = pneg %p57
      %p260 = pneg %p81
      %p261 = pneg %p78
      %p262 = pneg %p102
      %p263 = pneg %p99
      %p264 = pneg %p123
      %p265 = pneg %p120
      %p266 = pneg %p144
      %p267 = pneg %p141
      %p268 = pneg %p165
      %p269 = pneg %p162
      %p270 = pneg %p195
      %p271 = pneg %p192
      %s272 = smul.u32 %s25, %s24
      %s273 = smul.u32 2, %s272
      %p274 = scmp.lt.s32.totalorder %s23, 1
      %s275 = scalar_select %p274, %s23, 1
      %p276 = scmp.lt.s32.totalorder %s273, 1
      %s277 = scalar_select %p276, %s273, 1
      %s278 = smul.addr %s275, 8
      %s279 = sadd.s32 %s277, %s278
      %s280 = smul.addr %s279, 8
      %s281 = scalar_lea.vmem %s6, %s280
      %s282 = smul.u32 2, %s25
      %p283 = scmp.lt.s32.totalorder %s23, 1
      %s284 = scalar_select %p283, %s23, 1
      %p285 = scmp.lt.s32.totalorder %s282, 1
      %s286 = scalar_select %p285, %s282, 1
      %s287 = smul.addr %s284, 8
      %s288 = sadd.s32 %s286, %s287
      %s289 = smul.addr %s288, 8
      %s290 = scalar_lea.vmem %s0, %s289
      %s291 = smul.u32 2, %s25
      %s292 = smul.u32 %s25, %s24
      %s293 = smul.u32 2, %s292
      %p294 = scmp.lt.s32.totalorder %s23, 1
      %s295 = scalar_select %p294, %s23, 1
      %p296 = scmp.lt.s32.totalorder %s293, 1
      %s297 = scalar_select %p296, %s293, 1
      %s298 = smul.addr %s295, 8
      %s299 = sadd.s32 %s297, %s298
      %s300 = smul.addr %s299, 8
      %s301 = scalar_lea.vmem %s6, %s300
      %s302 = smul.u32 %s25, %s24
      %s303 = smul.u32 2, %s302
      %v304 = vld [vmem:[%s290] sm:$0xff]
      %v305 = vld [vmem:[%s290 + $0x8] sm:$0xff]
      %v306 = vld [vmem:[%s290 + $0x10] sm:$0xff]
      %v307 = vld [vmem:[%s290 + $0x18] sm:$0xff]
      %v308 = vld [vmem:[%s290 + $0x20] sm:$0xff]
      %v309 = vld [vmem:[%s290 + $0x28] sm:$0xff]
      %v310 = vld [vmem:[%s290 + $0x30] sm:$0xff]
      %v311 = vld [vmem:[%s290 + $0x38] sm:$0xff]
      %p312 = scmp.eq.s32.totalorder %s24, 0
      %p313 = scmp.eq.s32.totalorder %s25, 0
      %p314 = pnand %p312, %p313
      %p315 = pneg %p314
      // Predicated region
      $region45: #{_pam_forward.1} parent=43 // pred_check
        _
      $region46: #{_pam_forward.1} parent=43 // pred_check_branch
        %317 = sbr.rel (%p314) target = $region48
      $region47: #{_pam_forward.1} parent=43 // pred_region
        %vm318 = vcmask 31744
        %319 = vst.msk [vmem:[#allocation2] sm:$0xff] %vm318, 0.0
        %320 = vst.msk [vmem:[#allocation2 + $0x8] sm:$0xff] %vm318, 0.0
        %321 = vst.msk [vmem:[#allocation2 + $0x10] sm:$0xff] %vm318, 0.0
        %322 = vst.msk [vmem:[#allocation2 + $0x18] sm:$0xff] %vm318, 0.0
        %vm323 = vcmask 3072
        %324 = vst.msk [vmem:[#allocation3] sm:$0xf] %vm323, 0.0
      $region48: #{_pam_forward.1} parent=43 // pred_fallthru
        _
      // Predicated region
      $region49: #{_pam_forward.1} parent=43 // pred_check
        %p325 = pneg %p312
      $region50: #{_pam_forward.1} parent=43 // pred_check_branch
        %327 = sbr.rel (%p325) target = $region52
      $region51: #{_pam_forward.1} parent=43 // pred_region
        %v328 = vld [vmem:[%s1] sm:$0xff]
        %v329 = vld [vmem:[%s1 + $0x8] sm:$0xff]
        %v330 = vld [vmem:[%s1 + $0x10] sm:$0xff]
        %v331 = vld [vmem:[%s1 + $0x18] sm:$0xff]
        %v332 = vld [vmem:[%s1 + $0x20] sm:$0xf]
        %v333 = vld [vmem:[%s2] sm:$0xff]
        %v334 = vld [vmem:[%s2 + $0x8] sm:$0xff]
        %v335 = vld [vmem:[%s2 + $0x10] sm:$0xff]
        %v336 = vld [vmem:[%s2 + $0x18] sm:$0xff]
        %v337 = vld [vmem:[%s2 + $0x20] sm:$0xf]
        %339 = vset.pattern.permute.xlu0 0
        %340 = vperm.xlu0 %339, %v333
        %v341 = vpop.permute.xlu0 %340
        %344 = vset.pattern.permute.xlu0 0
        %345 = vperm.xlu0 %344, %v334
        %v346 = vpop.permute.xlu0 %345
        %349 = vset.pattern.permute.xlu0 0
        %350 = vperm.xlu0 %349, %v335
        %v351 = vpop.permute.xlu0 %350
        %354 = vset.pattern.permute.xlu0 0
        %355 = vperm.xlu0 %354, %v336
        %v356 = vpop.permute.xlu0 %355
        %359 = vset.pattern.permute.xlu0 0
        %360 = vperm.xlu0 %359, %v337
        %v361 = vpop.permute.xlu0 %360
        %vm363 = vcmask 261120
        %v365 = vsel %vm363, %v328, 0
        %v368 = vsel %vm363, %v329, 0
        %v371 = vsel %vm363, %v330, 0
        %v374 = vsel %vm363, %v331, 0
        %v377 = vsel %vm363, %v332, 0
        %379 = vmatprep.subr.mxu0 %v305
        %380 = vmatpush1.msra.mxu0 %v304
        %381 = vmatprep.subr.mxu0 %v307
        %382 = vmatpush1.msra.mxu0 %v306
        %383 = vmatprep.subr.mxu0 %v309
        %384 = vmatpush1.msra.mxu0 %v308
        %385 = vmatprep.subr.mxu0 %v311
        %386 = vmatpush1.msra.mxu0 %v310
        %387 = vmatprep.subr.mxu0 0.0
        %388 = vmatpush1.msra.mxu0 0.0
        %389 = vmatprep.subr.mxu0 0.0
        %390 = vmatpush1.msra.mxu0 0.0
        %391 = vmatprep.subr.mxu0 0.0
        %392 = vmatpush1.msra.mxu0 0.0
        %393 = vmatprep.subr.mxu0 0.0
        %394 = vmatpush1.msra.mxu0 0.0
        %395 = vmatprep.subr.mxu0 0.0
        %396 = vmatpush1.msra.mxu0 0.0
        %397 = vmatprep.subr.mxu0 0.0
        %398 = vmatpush1.msra.mxu0 0.0
        %399 = vmatprep.subr.mxu0 0.0
        %400 = vmatpush1.msra.mxu0 0.0
        %401 = vmatprep.subr.mxu0 0.0
        %402 = vmatpush1.msra.mxu0 0.0
        %403 = vmatprep.subr.mxu0 0.0
        %404 = vmatpush1.msra.mxu0 0.0
        %405 = vmatprep.subr.mxu0 0.0
        %406 = vmatpush1.msra.mxu0 0.0
        %407 = vmatprep.subr.mxu0 0.0
        %408 = vmatpush1.msra.mxu0 0.0
        %409 = vmatprep.subr.mxu0 0.0
        %410 = vmatpush1.msra.mxu0 0.0
        %411 = vmatprep.subr.mxu0 0.0
        %412 = vmatpush1.msra.mxu0 0.0
        %413 = vmatprep.subr.mxu0 0.0
        %414 = vmatpush1.msra.mxu0 0.0
        %415 = vmatprep.subr.mxu0 0.0
        %416 = vmatpush1.msra.mxu0 0.0
        %417 = vmatprep.subr.mxu0 0.0
        %418 = vmatpush1.msra.mxu0 0.0
        %419 = vmatprep.subr.mxu0 0.0
        %420 = vmatpush1.msra.mxu0 0.0
        %421 = vmatprep.subr.mxu0 0.0
        %422 = vmatpush1.msra.mxu0 0.0
        %423 = vmatprep.subr.mxu0 0.0
        %424 = vmatpush1.msra.mxu0 0.0
        %425 = vmatprep.subr.mxu0 0.0
        %426 = vmatpush1.msra.mxu0 0.0
        %427 = vmatprep.subr.mxu0 0.0
        %428 = vmatpush1.msra.mxu0 0.0
        %429 = vmatprep.subr.mxu0 0.0
        %430 = vmatpush1.msra.mxu0 0.0
        %431 = vmatprep.subr.mxu0 0.0
        %432 = vmatpush1.msra.mxu0 0.0
        %433 = vmatprep.subr.mxu0 0.0
        %434 = vmatpush1.msra.mxu0 0.0
        %435 = vmatprep.subr.mxu0 0.0
        %436 = vmatpush1.msra.mxu0 0.0
        %437 = vmatprep.subr.mxu0 0.0
        %438 = vmatpush1.msra.mxu0 0.0
        %439 = vmatprep.subr.mxu0 0.0
        %440 = vmatpush1.msra.mxu0 0.0
        %441 = vmatprep.subr.mxu0 0.0
        %442 = vmatpush1.msra.mxu0 0.0
        %443 = vmatprep.mubr.f32.mxu0 0.0
        %444 = vmatmul.mubr.f32.gmra.mrb[0].mxu0 %v365
        %v445 = vpop.f32.mrb[0].mxu0
        %v446 = vadd.f32 %v341, %v445
        %v447 = vpop.f32.mrb[0].mxu0
        %v448 = vadd.f32 %v341, %v447
        %449 = vmatprep.mubr.f32.mxu0 0.0
        %450 = vmatmul.mubr.f32.gmra.mrb[0].mxu0 %v368
        %v451 = vpop.f32.mrb[0].mxu0
        %v452 = vadd.f32 %v346, %v451
        %v453 = vpop.f32.mrb[0].mxu0
        %v454 = vadd.f32 %v346, %v453
        %455 = vmatprep.mubr.f32.mxu0 0.0
        %456 = vmatmul.mubr.f32.gmra.mrb[0].mxu0 %v371
        %v457 = vpop.f32.mrb[0].mxu0
        %v458 = vadd.f32 %v351, %v457
        %v459 = vpop.f32.mrb[0].mxu0
        %v460 = vadd.f32 %v351, %v459
        %461 = vmatprep.mubr.f32.mxu0 0.0
        %462 = vmatmul.mubr.f32.gmra.mrb[0].mxu0 %v374
        %v463 = vpop.f32.mrb[0].mxu0
        %v464 = vadd.f32 %v356, %v463
        %v465 = vpop.f32.mrb[0].mxu0
        %v466 = vadd.f32 %v356, %v465
        %467 = vmatprep.mubr.f32.mxu0 0.0
        %468 = vmatmul.mubr.f32.gmra.mrb[0].mxu0 %v377
        %v469 = vpop.f32.mrb[0].mxu0
        %v470 = vadd.f32 %v361, %v469
        %v471 = vpop.f32.mrb[0].mxu0
        %v472 = vadd.f32 %v361, %v471
        %473 = vdwg.mxu0
        %vm474 = vcmp.gt.f32.partialorder %v470, 20.0
        %vm475 = vcmp.gt.f32.partialorder %v472, 20.0
        %v476 = vmin.f32 %v470, 20.0
        %v477 = vmin.f32 %v472, 20.0
        %v478 = vmul.f32 %v476, 1.442695
        %v479 = vpow.pop %v478
        %v480 = vmul.f32 %v477, 1.442695
        %v481 = vpow.pop %v480
        %v482 = vadd.f32 %v479, 1.0
        %v483 = vlog2.pop %v482
        %v484 = vmul.f32 %v483, 0.6931472
        %v485 = vmul.f32 -0.5, %v479
        %v486 = vadd.f32 %v485, 1.0
        %v487 = vmul.f32 %v486, %v479
        %v488 = vand.u32 2147483647, %v479
        %vm489 = vcmp.lt.f32.partialorder %v488, 0.0004427343
        %v490 = vsel %vm489, %v487, %v484
        %v491 = vadd.f32 %v481, 1.0
        %v492 = vlog2.pop %v491
        %v493 = vmul.f32 %v492, 0.6931472
        %v494 = vmul.f32 -0.5, %v481
        %v495 = vadd.f32 %v494, 1.0
        %v496 = vmul.f32 %v495, %v481
        %v497 = vand.u32 2147483647, %v481
        %vm498 = vcmp.lt.f32.partialorder %v497, 0.0004427343
        %v499 = vsel %vm498, %v496, %v493
        %v500 = vsel %vm474, %v470, %v490
        %v501 = vsel %vm475, %v472, %v499
        %v502 = vld [vmem:[#allocation2] sm:$0xff]
        %v503 = vld [vmem:[#allocation2 + $0x8] sm:$0xff]
        %v504 = vld [vmem:[#allocation2 + $0x10] sm:$0xff]
        %v505 = vld [vmem:[#allocation2 + $0x18] sm:$0xff]
        %506 = vmatprep.subr.mxu0 %v501
        %507 = vmatpush1.xpose.msra.mxu0 %v500
        %508 = vmatprep.subr.mxu0 0.0
        %509 = vmatpush1.xpose.msra.mxu0 0.0
        %510 = vmatprep.subr.mxu0 0.0
        %511 = vmatpush1.xpose.msra.mxu0 0.0
        %512 = vmatprep.subr.mxu0 0.0
        %513 = vmatpush1.xpose.msra.mxu0 0.0
        %514 = vmatprep.subr.mxu0 0.0
        %515 = vmatpush1.xpose.msra.mxu0 0.0
        %516 = vmatprep.subr.mxu0 0.0
        %517 = vmatpush1.xpose.msra.mxu0 0.0
        %518 = vmatprep.subr.mxu0 0.0
        %519 = vmatpush1.xpose.msra.mxu0 0.0
        %520 = vmatprep.subr.mxu0 0.0
        %521 = vmatpush1.xpose.msra.mxu0 0.0
        %522 = vmatprep.subr.mxu0 0.0
        %523 = vmatpush1.xpose.msra.mxu0 0.0
        %524 = vmatprep.subr.mxu0 0.0
        %525 = vmatpush1.xpose.msra.mxu0 0.0
        %526 = vmatprep.subr.mxu0 0.0
        %527 = vmatpush1.xpose.msra.mxu0 0.0
        %528 = vmatprep.subr.mxu0 0.0
        %529 = vmatpush1.xpose.msra.mxu0 0.0
        %530 = vmatprep.subr.mxu0 0.0
        %531 = vmatpush1.xpose.msra.mxu0 0.0
        %532 = vmatprep.subr.mxu0 0.0
        %533 = vmatpush1.xpose.msra.mxu0 0.0
        %534 = vmatprep.subr.mxu0 0.0
        %535 = vmatpush1.xpose.msra.mxu0 0.0
        %536 = vmatprep.subr.mxu0 0.0
        %537 = vmatpush1.xpose.msra.mxu0 0.0
        %538 = vmatprep.subr.mxu0 0.0
        %539 = vmatpush1.xpose.msra.mxu0 0.0
        %540 = vmatprep.subr.mxu0 0.0
        %541 = vmatpush1.xpose.msra.mxu0 0.0
        %542 = vmatprep.subr.mxu0 0.0
        %543 = vmatpush1.xpose.msra.mxu0 0.0
        %544 = vmatprep.subr.mxu0 0.0
        %545 = vmatpush1.xpose.msra.mxu0 0.0
        %546 = vmatprep.subr.mxu0 0.0
        %547 = vmatpush1.xpose.msra.mxu0 0.0
        %548 = vmatprep.subr.mxu0 0.0
        %549 = vmatpush1.xpose.msra.mxu0 0.0
        %550 = vmatprep.subr.mxu0 0.0
        %551 = vmatpush1.xpose.msra.mxu0 0.0
        %552 = vmatprep.subr.mxu0 0.0
        %553 = vmatpush1.xpose.msra.mxu0 0.0
        %554 = vmatprep.subr.mxu0 0.0
        %555 = vmatpush1.xpose.msra.mxu0 0.0
        %556 = vmatprep.subr.mxu0 0.0
        %557 = vmatpush1.xpose.msra.mxu0 0.0
        %558 = vmatprep.subr.mxu0 0.0
        %559 = vmatpush1.xpose.msra.mxu0 0.0
        %560 = vmatprep.subr.mxu0 0.0
        %561 = vmatpush1.xpose.msra.mxu0 0.0
        %562 = vmatprep.subr.mxu0 0.0
        %563 = vmatpush1.xpose.msra.mxu0 0.0
        %564 = vmatprep.subr.mxu0 0.0
        %565 = vmatpush1.xpose.msra.mxu0 0.0
        %566 = vmatprep.subr.mxu0 0.0
        %567 = vmatpush1.xpose.msra.mxu0 0.0
        %568 = vmatprep.subr.mxu0 0.0
        %569 = vmatpush1.xpose.msra.mxu0 0.0
        %570 = vmatprep.mubr.f32.mxu0 %v448
        %571 = vmatmul.mubr.f32.gmra.mrb[0].mxu0 %v446
        %v572 = vpop.f32.mrb[0].mxu0
        %v573 = vadd.f32 0.0, %v572
        %v574 = vpop.f32.mrb[0].mxu0
        %575 = vmatprep.mubr.f32.mxu0 %v454
        %576 = vmatmul.mubr.f32.gmra.mrb[0].mxu0 %v452
        %v577 = vpop.f32.mrb[0].mxu0
        %v578 = vadd.f32 0.0, %v577
        %v579 = vpop.f32.mrb[0].mxu0
        %580 = vmatprep.mubr.f32.mxu0 %v460
        %581 = vmatmul.mubr.f32.gmra.mrb[0].mxu0 %v458
        %v582 = vpop.f32.mrb[0].mxu0
        %v583 = vadd.f32 0.0, %v582
        %v584 = vpop.f32.mrb[0].mxu0
        %585 = vmatprep.mubr.f32.mxu0 %v466
        %586 = vmatmul.mubr.f32.gmra.mrb[0].mxu0 %v464
        %v587 = vpop.f32.mrb[0].mxu0
        %v588 = vadd.f32 0.0, %v587
        %v589 = vpop.f32.mrb[0].mxu0
        %590 = vdwg.mxu0
        %v591 = vadd.f32 %v502, %v573
        %v592 = vadd.f32 %v503, %v578
        %v593 = vadd.f32 %v504, %v583
        %v594 = vadd.f32 %v505, %v588
        %vm595 = vcmask 31744
        %596 = vst.msk [vmem:[#allocation2] sm:$0xff] %vm595, %v591
        %597 = vst.msk [vmem:[#allocation2 + $0x8] sm:$0xff] %vm595, %v592
        %598 = vst.msk [vmem:[#allocation2 + $0x10] sm:$0xff] %vm595, %v593
        %599 = vst.msk [vmem:[#allocation2 + $0x18] sm:$0xff] %vm595, %v594
        %v600 = vld [vmem:[#allocation3] sm:$0xf]
        %vm601 = vcmask 1043456
        %v602 = vsel %vm601, %v500, 0.0
        %v603 = vsel %vm601, %v501, 0.0
        %v604 = vadd.f32 %v602, %v603
        %605 = vadd.xlane.f32.xlu0 %v604
        %v606 = vpop.xlane.xlu0 %605
        %v607 = vadd.f32 %v600, %v606
        %vm608 = vcmask 3072
        %609 = vst.msk [vmem:[#allocation3] sm:$0xf] %vm608, %v607
      $region52: #{_pam_forward.1} parent=43 // pred_fallthru
        _
      %p610 = scmp.eq.s32.totalorder %s24, 1
      // Predicated region
      $region53: #{_pam_forward.1} parent=43 // pred_check
        %p611 = pneg %p610
      $region54: #{_pam_forward.1} parent=43 // pred_check_branch
        %613 = sbr.rel (%p611) target = $region56
      $region55: #{_pam_forward.1} parent=43 // pred_region
        %v614 = vld [vmem:[%s3] sm:$0xf]
        %v615 = vld [vmem:[%s4] sm:$0xf]
        %617 = vset.pattern.permute.xlu0 0
        %618 = vperm.xlu0 %617, %v615
        %v619 = vpop.permute.xlu0 %618
        %vm621 = vcmask 261120
        %v623 = vsel %vm621, %v614, 0
        %625 = vmatprep.subr.mxu0 %v305
        %626 = vmatpush1.msra.mxu0 %v304
        %627 = vmatprep.subr.mxu0 %v307
        %628 = vmatpush1.msra.mxu0 %v306
        %629 = vmatprep.subr.mxu0 %v309
        %630 = vmatpush1.msra.mxu0 %v308
        %631 = vmatprep.subr.mxu0 %v311
        %632 = vmatpush1.msra.mxu0 %v310
        %633 = vmatprep.subr.mxu0 0.0
        %634 = vmatpush1.msra.mxu0 0.0
        %635 = vmatprep.subr.mxu0 0.0
        %636 = vmatpush1.msra.mxu0 0.0
        %637 = vmatprep.subr.mxu0 0.0
        %638 = vmatpush1.msra.mxu0 0.0
        %639 = vmatprep.subr.mxu0 0.0
        %640 = vmatpush1.msra.mxu0 0.0
        %641 = vmatprep.subr.mxu0 0.0
        %642 = vmatpush1.msra.mxu0 0.0
        %643 = vmatprep.subr.mxu0 0.0
        %644 = vmatpush1.msra.mxu0 0.0
        %645 = vmatprep.subr.mxu0 0.0
        %646 = vmatpush1.msra.mxu0 0.0
        %647 = vmatprep.subr.mxu0 0.0
        %648 = vmatpush1.msra.mxu0 0.0
        %649 = vmatprep.subr.mxu0 0.0
        %650 = vmatpush1.msra.mxu0 0.0
        %651 = vmatprep.subr.mxu0 0.0
        %652 = vmatpush1.msra.mxu0 0.0
        %653 = vmatprep.subr.mxu0 0.0
        %654 = vmatpush1.msra.mxu0 0.0
        %655 = vmatprep.subr.mxu0 0.0
        %656 = vmatpush1.msra.mxu0 0.0
        %657 = vmatprep.subr.mxu0 0.0
        %658 = vmatpush1.msra.mxu0 0.0
        %659 = vmatprep.subr.mxu0 0.0
        %660 = vmatpush1.msra.mxu0 0.0
        %661 = vmatprep.subr.mxu0 0.0
        %662 = vmatpush1.msra.mxu0 0.0
        %663 = vmatprep.subr.mxu0 0.0
        %664 = vmatpush1.msra.mxu0 0.0
        %665 = vmatprep.subr.mxu0 0.0
        %666 = vmatpush1.msra.mxu0 0.0
        %667 = vmatprep.subr.mxu0 0.0
        %668 = vmatpush1.msra.mxu0 0.0
        %669 = vmatprep.subr.mxu0 0.0
        %670 = vmatpush1.msra.mxu0 0.0
        %671 = vmatprep.subr.mxu0 0.0
        %672 = vmatpush1.msra.mxu0 0.0
        %673 = vmatprep.subr.mxu0 0.0
        %674 = vmatpush1.msra.mxu0 0.0
        %675 = vmatprep.subr.mxu0 0.0
        %676 = vmatpush1.msra.mxu0 0.0
        %677 = vmatprep.subr.mxu0 0.0
        %678 = vmatpush1.msra.mxu0 0.0
        %679 = vmatprep.subr.mxu0 0.0
        %680 = vmatpush1.msra.mxu0 0.0
        %681 = vmatprep.subr.mxu0 0.0
        %682 = vmatpush1.msra.mxu0 0.0
        %683 = vmatprep.subr.mxu0 0.0
        %684 = vmatpush1.msra.mxu0 0.0
        %685 = vmatprep.subr.mxu0 0.0
        %686 = vmatpush1.msra.mxu0 0.0
        %687 = vmatprep.subr.mxu0 0.0
        %688 = vmatpush1.msra.mxu0 0.0
        %689 = vmatprep.mubr.f32.mxu0 0.0
        %690 = vmatmul.mubr.f32.gmra.mrb[0].mxu0 %v623
        %v691 = vpop.f32.mrb[0].mxu0
        %v692 = vadd.f32 %v619, %v691
        %v693 = vpop.f32.mrb[0].mxu0
        %v694 = vadd.f32 %v619, %v693
        %695 = vdwg.mxu0
        %vm696 = vcmp.gt.f32.partialorder %v692, 20.0
        %vm697 = vcmp.gt.f32.partialorder %v694, 20.0
        %v698 = vmin.f32 %v692, 20.0
        %v699 = vmin.f32 %v694, 20.0
        %v700 = vmul.f32 %v698, 1.442695
        %v701 = vpow.pop %v700
        %v702 = vmul.f32 %v699, 1.442695
        %v703 = vpow.pop %v702
        %v704 = vadd.f32 %v701, 1.0
        %v705 = vlog2.pop %v704
        %v706 = vmul.f32 %v705, 0.6931472
        %v707 = vmul.f32 -0.5, %v701
        %v708 = vadd.f32 %v707, 1.0
        %v709 = vmul.f32 %v708, %v701
        %v710 = vand.u32 2147483647, %v701
        %vm711 = vcmp.lt.f32.partialorder %v710, 0.0004427343
        %v712 = vsel %vm711, %v709, %v706
        %v713 = vadd.f32 %v703, 1.0
        %v714 = vlog2.pop %v713
        %v715 = vmul.f32 %v714, 0.6931472
        %v716 = vmul.f32 -0.5, %v703
        %v717 = vadd.f32 %v716, 1.0
        %v718 = vmul.f32 %v717, %v703
        %v719 = vand.u32 2147483647, %v703
        %vm720 = vcmp.lt.f32.partialorder %v719, 0.0004427343
        %v721 = vsel %vm720, %v718, %v715
        %v722 = vsel %vm696, %v692, %v712
        %v723 = vsel %vm697, %v694, %v721
        %v724 = vld [vmem:[#allocation2] sm:$0xff]
        %v725 = vld [vmem:[#allocation2 + $0x8] sm:$0xff]
        %v726 = vld [vmem:[#allocation2 + $0x10] sm:$0xff]
        %v727 = vld [vmem:[#allocation2 + $0x18] sm:$0xff]
        %v728 = vld [vmem:[#allocation3] sm:$0xf]
        %v729 = vadd.f32 %v728, 1e-06
        %731 = vset.pattern.permute.xlu0 0
        %732 = vperm.xlu0 %731, %v724
        %v733 = vpop.permute.xlu0 %732
        %736 = vset.pattern.permute.xlu0 0
        %737 = vperm.xlu0 %736, %v725
        %v738 = vpop.permute.xlu0 %737
        %741 = vset.pattern.permute.xlu0 0
        %742 = vperm.xlu0 %741, %v726
        %v743 = vpop.permute.xlu0 %742
        %746 = vset.pattern.permute.xlu0 0
        %747 = vperm.xlu0 %746, %v727
        %v748 = vpop.permute.xlu0 %747
        %v750 = vlaneseq
        %v751 = vshrl.u32 %v750, 7
        %v752 = vsub.s32 0, %v751
        %v753 = vrot.slane %v722, %v752
        %v754 = vlaneseq
        %v755 = vshrl.u32 %v754, 7
        %v756 = vsub.s32 0, %v755
        %v757 = vrot.slane %v723, %v756
        %v758 = vmul.f32 %v733, %v753
        %v759 = vmul.f32 %v733, %v757
        %v760 = vmul.f32 %v738, %v753
        %v761 = vmul.f32 %v738, %v757
        %v762 = vmul.f32 %v743, %v753
        %v763 = vmul.f32 %v743, %v757
        %v764 = vmul.f32 %v748, %v753
        %v765 = vmul.f32 %v748, %v757
        %767 = vset.pattern.permute.xlu0 0
        %768 = vperm.xlu0 %767, %v729
        %v769 = vpop.permute.xlu0 %768
        %v771 = vmul.f32 %v769, %v722
        %v772 = vmul.f32 %v769, %v723
        %773 = vset.pattern.permute.xlu0 1
        %774 = vperm.xlu0 %773, %v724
        %v775 = vpop.permute.xlu0 %774
        %777 = vset.pattern.permute.xlu0 1
        %778 = vperm.xlu0 %777, %v725
        %v779 = vpop.permute.xlu0 %778
        %781 = vset.pattern.permute.xlu0 1
        %782 = vperm.xlu0 %781, %v726
        %v783 = vpop.permute.xlu0 %782
        %785 = vset.pattern.permute.xlu0 1
        %786 = vperm.xlu0 %785, %v727
        %v787 = vpop.permute.xlu0 %786
        %v789 = vlaneseq
        %v790 = vshrl.u32 %v789, 7
        %v791 = vsub.s32 1, %v790
        %v792 = vrot.slane %v722, %v791
        %v793 = vlaneseq
        %v794 = vshrl.u32 %v793, 7
        %v795 = vsub.s32 1, %v794
        %v796 = vrot.slane %v723, %v795
        %v797 = vmul.f32 %v775, %v792
        %v798 = vmul.f32 %v775, %v796
        %v799 = vmul.f32 %v779, %v792
        %v800 = vmul.f32 %v779, %v796
        %v801 = vmul.f32 %v783, %v792
        %v802 = vmul.f32 %v783, %v796
        %v803 = vmul.f32 %v787, %v792
        %v804 = vmul.f32 %v787, %v796
        %v805 = vadd.f32 %v758, %v797
        %v806 = vadd.f32 %v759, %v798
        %v807 = vadd.f32 %v760, %v799
        %v808 = vadd.f32 %v761, %v800
        %v809 = vadd.f32 %v762, %v801
        %v810 = vadd.f32 %v763, %v802
        %v811 = vadd.f32 %v764, %v803
        %v812 = vadd.f32 %v765, %v804
        %v815 = vrot.slane %v771, 1
        %v816 = vrot.slane %v772, 1
        %v819 = vadd.f32 %v771, %v815
        %v820 = vadd.f32 %v772, %v816
        %821 = vset.pattern.permute.xlu0 2
        %822 = vperm.xlu0 %821, %v724
        %v823 = vpop.permute.xlu0 %822
        %825 = vset.pattern.permute.xlu0 2
        %826 = vperm.xlu0 %825, %v725
        %v827 = vpop.permute.xlu0 %826
        %829 = vset.pattern.permute.xlu0 2
        %830 = vperm.xlu0 %829, %v726
        %v831 = vpop.permute.xlu0 %830
        %833 = vset.pattern.permute.xlu0 2
        %834 = vperm.xlu0 %833, %v727
        %v835 = vpop.permute.xlu0 %834
        %v837 = vlaneseq
        %v838 = vshrl.u32 %v837, 7
        %v839 = vsub.s32 2, %v838
        %v840 = vrot.slane %v722, %v839
        %v841 = vlaneseq
        %v842 = vshrl.u32 %v841, 7
        %v843 = vsub.s32 2, %v842
        %v844 = vrot.slane %v723, %v843
        %v845 = vmul.f32 %v823, %v840
        %v846 = vmul.f32 %v823, %v844
        %v847 = vmul.f32 %v827, %v840
        %v848 = vmul.f32 %v827, %v844
        %v849 = vmul.f32 %v831, %v840
        %v850 = vmul.f32 %v831, %v844
        %v851 = vmul.f32 %v835, %v840
        %v852 = vmul.f32 %v835, %v844
        %v853 = vadd.f32 %v805, %v845
        %v854 = vadd.f32 %v806, %v846
        %v855 = vadd.f32 %v807, %v847
        %v856 = vadd.f32 %v808, %v848
        %v857 = vadd.f32 %v809, %v849
        %v858 = vadd.f32 %v810, %v850
        %v859 = vadd.f32 %v811, %v851
        %v860 = vadd.f32 %v812, %v852
        %v861 = vrot.slane %v771, 2
        %v862 = vrot.slane %v772, 2
        %v865 = vadd.f32 %v819, %v861
        %v866 = vadd.f32 %v820, %v862
        %867 = vset.pattern.permute.xlu0 3
        %868 = vperm.xlu0 %867, %v724
        %v869 = vpop.permute.xlu0 %868
        %871 = vset.pattern.permute.xlu0 3
        %872 = vperm.xlu0 %871, %v725
        %v873 = vpop.permute.xlu0 %872
        %875 = vset.pattern.permute.xlu0 3
        %876 = vperm.xlu0 %875, %v726
        %v877 = vpop.permute.xlu0 %876
        %879 = vset.pattern.permute.xlu0 3
        %880 = vperm.xlu0 %879, %v727
        %v881 = vpop.permute.xlu0 %880
        %v883 = vlaneseq
        %v884 = vshrl.u32 %v883, 7
        %v885 = vsub.s32 3, %v884
        %v886 = vrot.slane %v722, %v885
        %v887 = vlaneseq
        %v888 = vshrl.u32 %v887, 7
        %v889 = vsub.s32 3, %v888
        %v890 = vrot.slane %v723, %v889
        %v891 = vmul.f32 %v869, %v886
        %v892 = vmul.f32 %v869, %v890
        %v893 = vmul.f32 %v873, %v886
        %v894 = vmul.f32 %v873, %v890
        %v895 = vmul.f32 %v877, %v886
        %v896 = vmul.f32 %v877, %v890
        %v897 = vmul.f32 %v881, %v886
        %v898 = vmul.f32 %v881, %v890
        %v899 = vadd.f32 %v853, %v891
        %v900 = vadd.f32 %v854, %v892
        %v901 = vadd.f32 %v855, %v893
        %v902 = vadd.f32 %v856, %v894
        %v903 = vadd.f32 %v857, %v895
        %v904 = vadd.f32 %v858, %v896
        %v905 = vadd.f32 %v859, %v897
        %v906 = vadd.f32 %v860, %v898
        %v907 = vrot.slane %v771, 3
        %v908 = vrot.slane %v772, 3
        %v911 = vadd.f32 %v865, %v907
        %v912 = vadd.f32 %v866, %v908
        %v913 = vrcp.pop %v911
        %v914 = vrcp.pop %v912
        %s915 = sld [smem:[#allocation4]]
        %v916 = vlaneseq
        %v917 = vshrl.u32 %v916, 7
        %v918 = vsub.s32 0, %v917
        %v919 = vrot.slane %v913, %v918
        %v920 = vlaneseq
        %v921 = vshrl.u32 %v920, 7
        %v922 = vsub.s32 0, %v921
        %v923 = vrot.slane %v914, %v922
        %v924 = vmul.f32 %v899, %v919
        %v925 = vmul.f32 %v900, %v923
        %v926 = vmul.f32 %v901, %v919
        %v927 = vmul.f32 %v902, %v923
        %v928 = vmul.f32 %v903, %v919
        %v929 = vmul.f32 %v904, %v923
        %v930 = vmul.f32 %v905, %v919
        %v931 = vmul.f32 %v906, %v923
        %v932 = vstv %s915
        %v933 = vmul.f32 %v932, %v924
        %v934 = vmul.f32 %v932, %v925
        %v935 = vmul.f32 %v932, %v926
        %v936 = vmul.f32 %v932, %v927
        %v937 = vmul.f32 %v932, %v928
        %v938 = vmul.f32 %v932, %v929
        %v939 = vmul.f32 %v932, %v930
        %v940 = vmul.f32 %v932, %v931
        %v941 = vadd.f32 %v304, %v933
        %v942 = vadd.f32 %v305, %v934
        %v943 = vadd.f32 %v306, %v935
        %v944 = vadd.f32 %v307, %v936
        %v945 = vadd.f32 %v308, %v937
        %v946 = vadd.f32 %v309, %v938
        %v947 = vadd.f32 %v310, %v939
        %v948 = vadd.f32 %v311, %v940
        %949 = vst [vmem:[%s301] sm:$0xff] %v941
        %950 = vst [vmem:[%s301 + $0x8] sm:$0xff] %v942
        %951 = vst [vmem:[%s301 + $0x10] sm:$0xff] %v943
        %952 = vst [vmem:[%s301 + $0x18] sm:$0xff] %v944
        %953 = vst [vmem:[%s301 + $0x20] sm:$0xff] %v945
        %954 = vst [vmem:[%s301 + $0x28] sm:$0xff] %v946
        %955 = vst [vmem:[%s301 + $0x30] sm:$0xff] %v947
        %956 = vst [vmem:[%s301 + $0x38] sm:$0xff] %v948
      $region56: #{_pam_forward.1} parent=43 // pred_fallthru
        _
      %s957 = smul.u32 %s25, %s24
      %s958 = smul.u32 2, %s957
      %p959 = scmp.lt.s32.totalorder %s23, 1
      %s960 = scalar_select %p959, %s23, 1
      %p961 = scmp.lt.s32.totalorder %s958, 1
      %s962 = scalar_select %p961, %s958, 1
      %s963 = smul.addr %s960, 8
      %s964 = sadd.s32 %s962, %s963
      %s965 = smul.addr %s964, 8
      %s966 = scalar_lea.vmem %s6, %s965
      // Predicated region
      $region57: #{_pam_forward.1} parent=43 // pred_check
        %p967 = pneg %p192
      $region58: #{_pam_forward.1} parent=43 // pred_check_branch
        %969 = sbr.rel (%p967) target = $region60
      $region59: #{_pam_forward.1} parent=43 // pred_region
        %s970 = smul.u32 %s25, %s24
        %s971 = smul.u32 2, %s970
      $region60: #{_pam_forward.1} parent=43 // pred_fallthru
        _
    $region44: #{_pam_forward.1} parent=5 // pred_fallthru
      _
    %p972 = scmp.le.s32.totalorder 2, %s13
    // Predicated region
    $region61: #{_pam_forward.1} parent=5 // pred_check
      %p973 = pneg %p972
    $region62: #{_pam_forward.1} parent=5 // pred_check_branch
      %975 = sbr.rel (%p973) target = $region64
    $region63: #{_pam_forward.1} parent=5 // pred_region
      %s976 = ssub.s32 %s13, 2
      // Predicated region
      $region65: #{_pam_forward.1} parent=63 // pred_check
        %p977 = pneg %p198
      $region66: #{_pam_forward.1} parent=63 // pred_check_branch
        %979 = sbr.rel (%p977) target = $region68
      $region67: #{_pam_forward.1} parent=63 // pred_region
        %s980 = smul.u32 %s28, %s27
        %s981 = smul.u32 2, %s980
        %p982 = scmp.lt.s32.totalorder %s26, 1
        %s983 = scalar_select %p982, %s26, 1
        %p984 = scmp.lt.s32.totalorder %s981, 1
        %s985 = scalar_select %p984, %s981, 1
        %s986 = smul.addr %s983, 8
        %s987 = sadd.s32 %s985, %s986
        %s988 = smul.addr %s987, 8
        %s989 = scalar_lea.vmem %s6, %s988
      $region68: #{_pam_forward.1} parent=63 // pred_fallthru
        _
    $region64: #{_pam_forward.1} parent=5 // pred_fallthru
      _
  $region6: #{_pam_forward.1} parent=0 // loop_footer
    %s17 = sadd.s32 1, %s13
  $region7: #{_pam_forward.1} parent=0 // loop_footer_branch
    %12 = sbr.rel target = $region3
  $region8: #{_pam_forward.1} parent=0 // loop_exit
    _

</llo_original>
